<compile_context>
chip_gen: v5e
topology: v5e:2x2
jax: 0.10.0
libtpu: 0.0.40
codegen_flags: <defaults>
</compile_context>

<pallas_src>
import jax
import jax.numpy as jnp
from jax.experimental import pallas as pl
from jax.experimental.pallas import tpu as pltpu

BN_EPS = 1e-5
LANE = 128


def _vmem_budget_bytes():
    """Generation-aware per-kernel VMEM working budget (conservative)."""
    cap = None
    try:
        cap = getattr(pltpu.get_tpu_info(), "vmem_capacity_bytes", None)
    except Exception:
        cap = None
    if not cap:
        cap = 64 * 1024 * 1024               # conservative fallback (v7x-sized VMEM)
    return int(min(cap // 2, 32 * 1024 * 1024))


def _choose_tile_m(m_ru, bytes_per_col, budget):
    """Pick the lane-tile size (multiple of 128).

    Largest tile whose double-buffered in/out tiles fit half the budget; prefer a
    tile that divides m_ru exactly (no padding, epilogue slice becomes a no-op).
    """
    cap = (budget // 2) // max(bytes_per_col, 1)
    cap = max(LANE, (cap // LANE) * LANE)
    cap = min(cap, m_ru)
    q = m_ru // LANE
    d = max(1, cap // LANE)
    while d > 1 and q % d != 0:
        d -= 1
    best = d * LANE
    if best * 4 < cap:                       # only tiny divisors exist -> accept padding
        return cap
    return best


def _make_fr_kernel_cached(inv_m):
    """Single-pass variant: conv output cached in VMEM, x read from HBM only once."""

    def kernel(x_ref, w_ref, o_ref, sum_ref, ssq_ref, y_ref):
        phase = pl.program_id(0)
        t = pl.program_id(1)

        @pl.when(jnp.logical_and(phase == 0, t == 0))
        def _():
            sum_ref[...] = jnp.zeros_like(sum_ref)
            ssq_ref[...] = jnp.zeros_like(ssq_ref)

        @pl.when(phase == 0)
        def _():
            # Both 1x1 stride-2 convs + channel concat as one block-diagonal matmul.
            y = jnp.dot(w_ref[...], x_ref[...], preferred_element_type=jnp.float32)
            y_ref[t] = y                                           # cache tile in VMEM
            sum_ref[...] += jnp.sum(y, axis=1, keepdims=True)
            ssq_ref[...] += jnp.sum(y * y, axis=1, keepdims=True)

        @pl.when(phase == 1)
        def _():
            y = y_ref[t]
            mean = sum_ref[...] * inv_m                            # (C_out, 1), f32
            var = jnp.maximum(ssq_ref[...] * inv_m - mean * mean, 0.0)
            o_ref[...] = ((y - mean) * jax.lax.rsqrt(var + BN_EPS)).astype(o_ref.dtype)

    return kernel


def _make_fr_kernel_streamed(inv_m):
    """Fallback two-pass variant: phase 1 re-reads x and recomputes the cheap matmul."""

    def kernel(x_ref, w_ref, o_ref, sum_ref, ssq_ref):
        phase = pl.program_id(0)
        t = pl.program_id(1)

        @pl.when(jnp.logical_and(phase == 0, t == 0))
        def _():
            sum_ref[...] = jnp.zeros_like(sum_ref)
            ssq_ref[...] = jnp.zeros_like(ssq_ref)

        y = jnp.dot(w_ref[...], x_ref[...], preferred_element_type=jnp.float32)

        @pl.when(phase == 0)
        def _():
            sum_ref[...] += jnp.sum(y, axis=1, keepdims=True)
            ssq_ref[...] += jnp.sum(y * y, axis=1, keepdims=True)

        @pl.when(phase == 1)
        def _():
            mean = sum_ref[...] * inv_m
            var = jnp.maximum(ssq_ref[...] * inv_m - mean * mean, 0.0)
            o_ref[...] = ((y - mean) * jax.lax.rsqrt(var + BN_EPS)).astype(o_ref.dtype)

    return kernel


def factorized_reduce(x_nchw, w1, w2):
    """x_nchw: (N, C_in, H, W); w1, w2: PyTorch conv weights (C_out//2, C_in, 1, 1)."""
    N, C_in, H, W = x_nchw.shape
    # PyTorch's torch.cat requires both conv outputs to share spatial dims, which
    # only holds for even H/W -- so this assert matches the module's usable domain.
    assert H % 2 == 0 and W % 2 == 0
    Ho, Wo = H // 2, W // 2
    C_half = w1.shape[0]
    C_out = 2 * C_half
    M = N * Ho * Wo
    dt = x_nchw.dtype
    K = 2 * C_in
    K_pad = -(-K // 8) * 8                   # sublane-align the contraction dim

    # --- prep: single reshape/transpose fusion, NO dtype upcast (bf16 streams as bf16).
    # Deinterleave the two stride-2 phases and stack them on the small channel axis
    # -> lane-dense (K, M) operand with fully contiguous kernel DMAs.
    x_r = x_nchw.reshape(N, C_in, Ho, 2, Wo, 2)
    x_t = jnp.transpose(x_r, (3, 5, 1, 0, 2, 4))                   # (2, 2, C, N, Ho, Wo)
    x_packed = jnp.concatenate([x_t[0, 0], x_t[1, 1]], axis=0).reshape(K, M)

    # Block-diagonal weight: rows [:C_half] apply w1 to the even-phase channels,
    # rows [C_half:] apply w2 to the odd-phase channels -> concat comes for free.
    w1m = w1.reshape(C_half, C_in).astype(dt)
    w2m = w2.reshape(C_half, C_in).astype(dt)
    w_bd = jnp.zeros((C_out, K_pad), dt)
    w_bd = w_bd.at[:C_half, :C_in].set(w1m)
    w_bd = w_bd.at[C_half:, C_in:K].set(w2m)

    # Adaptive lane tiling over M (prefers m_pad == M so the epilogue slice is free).
    budget = _vmem_budget_bytes()
    x_item = jnp.dtype(dt).itemsize
    o_item = jnp.dtype(dt).itemsize
    m_ru = -(-M // LANE) * LANE
    bytes_per_col = 2 * (K_pad * x_item + C_out * o_item)          # double-buffered in/out
    tm = _choose_tile_m(m_ru, bytes_per_col, budget)
    m_pad = -(-M // tm) * tm
    n_tiles = m_pad // tm

    # Zero padding: extra K rows / M columns produce zero conv outputs, so BN sums
    # (divided by the true M) stay exact; padded output columns are sliced off below.
    if K_pad != K or m_pad != M:
        x_packed = jnp.pad(x_packed, ((0, K_pad - K), (0, m_pad - M)))

    # Single-pass (cached-y) when the whole conv output fits comfortably in VMEM.
    tile_bytes = 2 * tm * (K_pad * x_item + C_out * o_item)
    y_cache_bytes = n_tiles * C_out * tm * 4
    use_cache = (tile_bytes + y_cache_bytes) <= int(budget * 0.8)

    scratch = [pltpu.VMEM((C_out, 1), jnp.float32),                # per-channel sum
               pltpu.VMEM((C_out, 1), jnp.float32)]                # per-channel sum of squares
    if use_cache:
        kernel = _make_fr_kernel_cached(1.0 / M)
        scratch.append(pltpu.VMEM((n_tiles, C_out, tm), jnp.float32))
        # Phase 1 parks the input window on tile 0 (block index constant) -> Pallas
        # does not re-stream x from HBM; phase 1 reads y from the VMEM cache instead.
        x_index_map = lambda p, t: (0, t * (1 - p))
    else:
        kernel = _make_fr_kernel_streamed(1.0 / M)
        x_index_map = lambda p, t: (0, t)

    out_flat = pl.pallas_call(
        kernel,
        out_shape=jax.ShapeDtypeStruct((C_out, m_pad), dt),
        grid_spec=pltpu.PrefetchScalarGridSpec(
            num_scalar_prefetch=0,
            grid=(2, n_tiles),                                     # (BN phase, M tile)
            in_specs=[
                pl.BlockSpec((K_pad, tm), x_index_map),
                pl.BlockSpec((C_out, K_pad), lambda p, t: (0, 0)),  # weights stay resident
            ],
            # Phase 0 never writes; park its (unwritten) output block on tile 0 so
            # nothing is flushed to HBM until phase 1 has produced real data.
            out_specs=pl.BlockSpec((C_out, tm), lambda p, t: (0, t * p)),
            scratch_shapes=scratch),
        compiler_params=pltpu.CompilerParams(
            # Both axes are genuinely sequential: the tile axis accumulates BN
            # stats, the phase axis consumes the completed stats.
            dimension_semantics=("arbitrary", "arbitrary"),
            vmem_limit_bytes=int(budget)),
    )(x_packed, w_bd)

    if m_pad != M:
        out_flat = out_flat[:, :M]
    out = out_flat.reshape(C_out, N, Ho, Wo)
    # TODO(synk): downstream consumers could take the channel-first (C_out, N, Ho, Wo)
    # layout directly and skip this transpose; kept to match PyTorch NCHW semantics.
    return jnp.transpose(out, (1, 0, 2, 3))                        # (N, C_out, Ho, Wo)


def reduction_layer(pprev, prev, params):
    """ReductionLayer.forward: returns (reduce0(pprev), reduce1(prev))."""
    out0 = factorized_reduce(pprev, params["r0_w1"], params["r0_w2"])
    out1 = factorized_reduce(prev, params["r1_w1"], params["r1_w2"])
    return out0, out1


def _reference_factorized_reduce(x, w1, w2):
    # Pure-JAX reference for sanity checking.
    N, C_in, H, W = x.shape
    C_half = w1.shape[0]
    xe = x[:, :, 0::2, 0::2]
    xo = x[:, :, 1::2, 1::2]
    h1 = jnp.einsum("nchw,oc->nohw", xe, w1.reshape(C_half, C_in))
    h2 = jnp.einsum("nchw,oc->nohw", xo, w2.reshape(C_half, C_in))
    out = jnp.concatenate([h1, h2], axis=1)
    mean = jnp.mean(out, axis=(0, 2, 3), keepdims=True)
    var = jnp.mean((out - mean) ** 2, axis=(0, 2, 3), keepdims=True)
    return (out - mean) * jax.lax.rsqrt(var + BN_EPS)


if __name__ == "__main__":
    key = jax.random.PRNGKey(0)
    in_channels_pp, in_channels_p, out_channels = 4, 6, 8
    N, H, W = 2, 16, 16
    C_half = out_channels // 2

    k = jax.random.split(key, 6)
    pprev = jax.random.normal(k[0], (N, in_channels_pp, H, W), dtype=jnp.float32)
    prev = jax.random.normal(k[1], (N, in_channels_p, H, W), dtype=jnp.float32)

    # Deterministic synthetic conv weights (PyTorch shape: (C_out//2, C_in, 1, 1), bias=False).
    params = {
        "r0_w1": 0.1 * jax.random.normal(k[2], (C_half, in_channels_pp, 1, 1), dtype=jnp.float32),
        "r0_w2": 0.1 * jax.random.normal(k[3], (C_half, in_channels_pp, 1, 1), dtype=jnp.float32),
        "r1_w1": 0.1 * jax.random.normal(k[4], (C_half, in_channels_p, 1, 1), dtype=jnp.float32),
        "r1_w2": 0.1 * jax.random.normal(k[5], (C_half, in_channels_p, 1, 1), dtype=jnp.float32),
    }

    out0, out1 = jax.block_until_ready(reduction_layer(pprev, prev, params))

    ref0 = _reference_factorized_reduce(pprev, params["r0_w1"], params["r0_w2"])
    ref1 = _reference_factorized_reduce(prev, params["r1_w1"], params["r1_w2"])
    assert out0.shape == (N, out_channels, H // 2, W // 2)
    assert out1.shape == (N, out_channels, H // 2, W // 2)
    assert jnp.max(jnp.abs(out0 - ref0)) < 1e-4
    assert jnp.max(jnp.abs(out1 - ref1)) < 1e-4

    print("KERNEL_OK")
</pallas_src>

<mosaic_0001>
module attributes {stable_mosaic.version = 11 : i64} {
  func.func @kernel(%arg0: i32, %arg1: i32, %arg2: memref<8x128xf32, #tpu.memory_space<vmem>>, %arg3: memref<8x8xf32, #tpu.memory_space<vmem>>, %arg4: memref<8x128xf32, #tpu.memory_space<vmem>>, %arg5: memref<8x1xf32, #tpu.memory_space<vmem>>, %arg6: memref<8x1xf32, #tpu.memory_space<vmem>>, %arg7: memref<1x8x128xf32, #tpu.memory_space<vmem>>) attributes {dimension_semantics = [#tpu.dimension_semantics<arbitrary>, #tpu.dimension_semantics<arbitrary>], iteration_bounds = array<i64: 2, 1>, scalar_prefetch = 0 : i64, scratch_operands = 3 : i64, tpu.core_type = #tpu.core_type<tc>, window_params = [{transform_indices = @transform_0, window_bounds = array<i64: 8, 128>}, {pipeline_mode = #tpu.pipeline_mode<synchronous>, transform_indices = @transform_1, window_bounds = array<i64: 8, 8>}, {transform_indices = @transform_2, window_bounds = array<i64: 8, 128>}]} {
    %c0_i32 = arith.constant 0 : i32
    %0 = arith.cmpi eq, %arg0, %c0_i32 : i32
    %c0_i32_0 = arith.constant 0 : i32
    %1 = arith.cmpi eq, %arg1, %c0_i32_0 : i32
    %2 = arith.andi %0, %1 : i1
    %3 = arith.extui %2 : i1 to i32
    %c0_i32_1 = arith.constant 0 : i32
    %4 = arith.cmpi ne, %3, %c0_i32_1 : i32
    scf.if %4 {
      %cst = arith.constant 0.000000e+00 : f32
      %11 = vector.broadcast %cst : f32 to vector<8x1xf32>
      %c0 = arith.constant 0 : index
      %c0_5 = arith.constant 0 : index
      %12 = vector.load %arg5[%c0, %c0_5] : memref<8x1xf32, #tpu.memory_space<vmem>>, vector<8x1xf32>
      tpu.vector_store %arg5[%c0, %c0_5], %11 {strides = array<i32>} : memref<8x1xf32, #tpu.memory_space<vmem>>, vector<8x1xf32>,
      %cst_6 = arith.constant 0.000000e+00 : f32
      %13 = vector.broadcast %cst_6 : f32 to vector<8x1xf32>
      %c0_7 = arith.constant 0 : index
      %c0_8 = arith.constant 0 : index
      %14 = vector.load %arg6[%c0_7, %c0_8] : memref<8x1xf32, #tpu.memory_space<vmem>>, vector<8x1xf32>
      tpu.vector_store %arg6[%c0_7, %c0_8], %13 {strides = array<i32>} : memref<8x1xf32, #tpu.memory_space<vmem>>, vector<8x1xf32>,
    } else {
    }
    %c0_i32_2 = arith.constant 0 : i32
    %5 = arith.cmpi eq, %arg0, %c0_i32_2 : i32
    %6 = arith.extui %5 : i1 to i32
    %c0_i32_3 = arith.constant 0 : i32
    %7 = arith.cmpi ne, %6, %c0_i32_3 : i32
    scf.if %7 {
      %c0 = arith.constant 0 : index
      %c0_5 = arith.constant 0 : index
      %11 = vector.load %arg3[%c0, %c0_5] : memref<8x8xf32, #tpu.memory_space<vmem>>, vector<8x8xf32>
      %c0_6 = arith.constant 0 : index
      %c0_7 = arith.constant 0 : index
      %12 = vector.load %arg2[%c0_6, %c0_7] : memref<8x128xf32, #tpu.memory_space<vmem>>, vector<8x128xf32>
      %cst = arith.constant dense<0.000000e+00> : vector<8x128xf32>
      %13 = tpu.matmul %11, %12, %cst {dimension_numbers = #tpu.dot_dimension_numbers<[1], [0], [0], [1], [0, 0, 1, 1], [], []>} : vector<8x8xf32>, vector<8x128xf32>, vector<8x128xf32> -> vector<8x128xf32>
      %14 = arith.index_cast %arg1 : i32 to index
      %c0_8 = arith.constant 0 : index
      %c0_9 = arith.constant 0 : index
      %15 = vector.load %arg7[%14, %c0_8, %c0_9] : memref<1x8x128xf32, #tpu.memory_space<vmem>>, vector<1x8x128xf32>
      %16 = vector.shape_cast %15 : vector<1x8x128xf32> to vector<8x128xf32>
      %17 = vector.shape_cast %13 : vector<8x128xf32> to vector<1x8x128xf32>
      tpu.vector_store %arg7[%14, %c0_8, %c0_9], %17 {strides = array<i32>} : memref<1x8x128xf32, #tpu.memory_space<vmem>>, vector<1x8x128xf32>,
      %c0_10 = arith.constant 0 : index
      %c0_11 = arith.constant 0 : index
      %18 = vector.load %arg5[%c0_10, %c0_11] : memref<8x1xf32, #tpu.memory_space<vmem>>, vector<8x1xf32>
      %cst_12 = arith.constant dense<0.000000e+00> : vector<8xf32>
      %19 = vector.multi_reduction <add>, %13, %cst_12 [1] : vector<8x128xf32> to vector<8xf32>
      %20 = vector.shape_cast %19 : vector<8xf32> to vector<8x1xf32>
      %21 = arith.addf %18, %20 : vector<8x1xf32>
      %c0_13 = arith.constant 0 : index
      %c0_14 = arith.constant 0 : index
      %22 = vector.load %arg5[%c0_13, %c0_14] : memref<8x1xf32, #tpu.memory_space<vmem>>, vector<8x1xf32>
      tpu.vector_store %arg5[%c0_13, %c0_14], %21 {strides = array<i32>} : memref<8x1xf32, #tpu.memory_space<vmem>>, vector<8x1xf32>,
      %c0_15 = arith.constant 0 : index
      %c0_16 = arith.constant 0 : index
      %23 = vector.load %arg6[%c0_15, %c0_16] : memref<8x1xf32, #tpu.memory_space<vmem>>, vector<8x1xf32>
      %24 = arith.mulf %13, %13 : vector<8x128xf32>
      %cst_17 = arith.constant dense<0.000000e+00> : vector<8xf32>
      %25 = vector.multi_reduction <add>, %24, %cst_17 [1] : vector<8x128xf32> to vector<8xf32>
      %26 = vector.shape_cast %25 : vector<8xf32> to vector<8x1xf32>
      %27 = arith.addf %23, %26 : vector<8x1xf32>
      %c0_18 = arith.constant 0 : index
      %c0_19 = arith.constant 0 : index
      %28 = vector.load %arg6[%c0_18, %c0_19] : memref<8x1xf32, #tpu.memory_space<vmem>>, vector<8x1xf32>
      tpu.vector_store %arg6[%c0_18, %c0_19], %27 {strides = array<i32>} : memref<8x1xf32, #tpu.memory_space<vmem>>, vector<8x1xf32>,
    } else {
    }
    %c1_i32 = arith.constant 1 : i32
    %8 = arith.cmpi eq, %arg0, %c1_i32 : i32
    %9 = arith.extui %8 : i1 to i32
    %c0_i32_4 = arith.constant 0 : i32
    %10 = arith.cmpi ne, %9, %c0_i32_4 : i32
    scf.if %10 {
      %11 = arith.index_cast %arg1 : i32 to index
      %c0 = arith.constant 0 : index
      %c0_5 = arith.constant 0 : index
      %12 = vector.load %arg7[%11, %c0, %c0_5] : memref<1x8x128xf32, #tpu.memory_space<vmem>>, vector<1x8x128xf32>
      %13 = vector.shape_cast %12 : vector<1x8x128xf32> to vector<8x128xf32>
      %c0_6 = arith.constant 0 : index
      %c0_7 = arith.constant 0 : index
      %14 = vector.load %arg5[%c0_6, %c0_7] : memref<8x1xf32, #tpu.memory_space<vmem>>, vector<8x1xf32>
      %cst = arith.constant 7.812500e-03 : f32
      %15 = vector.broadcast %cst : f32 to vector<8x1xf32>
      %16 = arith.mulf %14, %15 : vector<8x1xf32>
      %c0_8 = arith.constant 0 : index
      %c0_9 = arith.constant 0 : index
      %17 = vector.load %arg6[%c0_8, %c0_9] : memref<8x1xf32, #tpu.memory_space<vmem>>, vector<8x1xf32>
      %cst_10 = arith.constant 7.812500e-03 : f32
      %18 = vector.broadcast %cst_10 : f32 to vector<8x1xf32>
      %19 = arith.mulf %17, %18 : vector<8x1xf32>
      %20 = arith.mulf %16, %16 : vector<8x1xf32>
      %21 = arith.subf %19, %20 : vector<8x1xf32>
      %cst_11 = arith.constant 0.000000e+00 : f32
      %22 = vector.broadcast %cst_11 : f32 to vector<8x1xf32>
      %23 = arith.maximumf %21, %22 : vector<8x1xf32>
      %24 = vector.broadcast %16 : vector<8x1xf32> to vector<8x128xf32>
      %25 = arith.subf %13, %24 : vector<8x128xf32>
      %cst_12 = arith.constant 9.99999974E-6 : f32
      %26 = vector.broadcast %cst_12 : f32 to vector<8x1xf32>
      %27 = arith.addf %23, %26 : vector<8x1xf32>
      %28 = math.rsqrt %27 : vector<8x1xf32>
      %29 = vector.broadcast %28 : vector<8x1xf32> to vector<8x128xf32>
      %30 = arith.mulf %25, %29 : vector<8x128xf32>
      %c0_13 = arith.constant 0 : index
      %c0_14 = arith.constant 0 : index
      %31 = vector.load %arg4[%c0_13, %c0_14] : memref<8x128xf32, #tpu.memory_space<vmem>>, vector<8x128xf32>
      tpu.vector_store %arg4[%c0_13, %c0_14], %30 {strides = array<i32>} : memref<8x128xf32, #tpu.memory_space<vmem>>, vector<8x128xf32>,
    } else {
    }
    return
  }
  func.func @transform_0(%arg0: i32, %arg1: i32) -> (i32, i32) {
    %c1_i32 = arith.constant 1 : i32
    %0 = arith.subi %c1_i32, %arg0 : i32
    %1 = arith.muli %arg1, %0 : i32
    %c0_i32 = arith.constant 0 : i32
    %c0_i32_0 = arith.constant 0 : i32
    return %c0_i32, %1 : i32, i32
  }
  func.func @transform_1(%arg0: i32, %arg1: i32) -> (i32, i32) {
    %c0_i32 = arith.constant 0 : i32
    %c0_i32_0 = arith.constant 0 : i32
    %c0_i32_1 = arith.constant 0 : i32
    return %c0_i32, %c0_i32_0 : i32, i32
  }
  func.func @transform_2(%arg0: i32, %arg1: i32) -> (i32, i32) {
    %0 = arith.muli %arg1, %arg0 : i32
    %c0_i32 = arith.constant 0 : i32
    %c0_i32_0 = arith.constant 0 : i32
    return %c0_i32, %0 : i32, i32
  }
}

</mosaic_0001>

<llo_original>
// kernel: tpu_custom_call.1
$region0: #{tpu_custom_call.1}
  #allocation0 [shape = 'u32[]', space=smem, size = 0x4, offset = 0x4, fixed_abs, tag = 'smem constant byte address 0x4 - core index']
  #allocation1 [shape = 'u32[72,128]{1,0:T(1,128)}', space=vmem, size = 0x9000, scoped, tag = 'internal scratch']
  #allocation2 [shape = 'f32[8,1]{1,0:T(8,128)}', space=vmem, size = 0x1000, scoped, tag = 'scratch operand']
  #allocation3 [shape = 'f32[8,1]{1,0:T(8,128)}', space=vmem, size = 0x1000, scoped, tag = 'scratch operand']
  #allocation4 [shape = 'f32[1,8,128]{2,1,0:T(8,128)}', space=vmem, size = 0x1000, scoped, tag = 'scratch operand']
  %s0 = inlined_call_operand.hbm [shape: f32[8,128], index: 0, kind: input, shape index: {}]
  %s1 = inlined_call_operand.hbm [shape: f32[8,8], index: 1, kind: input, shape index: {}]
  %s2 = inlined_call_operand.hbm [shape: f32[8,128], index: 2, kind: output, shape index: {}]
  %s3 = sld [smem:[#allocation0]]
  $region61: #{tpu_custom_call.1} parent=0
    _
  %s5 = ssub.s32 1, %s3
  %s6 = scalar_select 0, %s5, %s3
  $region1: #{tpu_custom_call.1} parent=0
    #allocation5 [shape = 'u8[8192]{0}', space=vmem, size = 0x2000, scoped, tag = 'input window, operand 0']
    #allocation6 [shape = 's32[2]{0}', space=sflag, size = 0x8, scoped, tag = 'scoped memory for tpu_custom_call.1']
    #allocation7 [shape = 's32[2]{0}', space=sflag, size = 0x8, scoped, tag = 'scoped memory for tpu_custom_call.1']
    #allocation8 [shape = 'u8[4096]{0}', space=vmem, size = 0x1000, scoped, tag = 'input window, operand 1, single buffered']
    #allocation9 [shape = 's32[1]{0}', space=sflag, size = 0x4, scoped, tag = 'scoped memory for tpu_custom_call.1']
    #allocation10 [shape = 'u8[8192]{0}', space=vmem, size = 0x2000, scoped, tag = 'output window, operand 0']
    %7 = vsyncpa [#allocation6], 0
    %s8 = scalar_lea.sflag [#allocation6], 1
    %9 = vsyncpa %s8, 0
    %10 = vsyncpa [#allocation9], 0
    %11 = vsyncpa [#allocation7], 0
    %s12 = scalar_lea.sflag [#allocation7], 1
    %13 = vsyncpa %s12, 0
    loop: start=0, step=1, limit=4
    $region2: #{tpu_custom_call.1} parent=1 // loop_pre_header
      _
    $region3: #{tpu_custom_call.1} parent=1 // loop_header
      %s15 = sphi 0, %s19
      %p16 = scmp.ge.s32.totalorder %s15, 4
      %s22 = sphi 0, %s34
      %s23 = sphi 0, %s30
      %s24 = sphi 0, %s22
      %s25 = sphi 0, %s23
      %s26 = sphi 0, %s24
      %s27 = sphi 0, %s25
      %s41 = sphi 0, %s43
      %s44 = sphi 0, %s41
      %s45 = sphi 0, %s44
      %s61 = sphi 0, %s45
      %s65 = sphi 0, %s65
      %s67 = sphi 0, %s65
      %s68 = sphi 0, %s67
      %s82 = sphi 0, %s68
      %s90 = sphi 0, %s92
      %s93 = sphi 0, %s90
      %s94 = sphi 0, %s93
      %s110 = sphi 0, %s94
    $region4: #{tpu_custom_call.1} parent=1 // loop_header_branch
      %18 = sbr.rel (%p16) target = $region8
    $region5: #{tpu_custom_call.1} parent=1 // loop_body
      %s20 = ssub.s32 %s15, 1
      %s21 = ssub.s32 %s15, 2
      %s28 = sadd.s32 1, %s23
      %p29 = scmp.ge.s32.totalorder %s28, 1
      %s30 = scalar_select %p29, 0, %s28
      %s31 = sadd.s32 1, %s22
      %s32 = scalar_select %p29, %s31, %s22
      %p33 = scmp.ge.s32.totalorder %s32, 2
      %s34 = scalar_select %p33, 0, %s32
      %s35 = ssub.s32 1, %s22
      %s36 = smul.u32 %s23, %s35
      %s37 = ssub.s32 1, %s34
      %s38 = smul.u32 %s30, %s37
      %s39 = ssub.s32 %s36, %s38
      %p40 = scmp.eq.s32.totalorder %s39, 0
      %s42 = sadd.s32 %s41, 1
      %s43 = scalar_select %p40, %s41, %s42
      %p46 = pneg %p40
      %p47 = scmp.eq.s32.totalorder %s15, 1
      %p48 = por %p46, %p47
      %p49 = scmp.ne.s32.totalorder %s41, %s44
      %p50 = scmp.eq.s32.totalorder %s15, 0
      %p51 = por %p49, %p50
      %p52 = scmp.ne.s32.totalorder %s41, %s44
      %p53 = scmp.eq.s32.totalorder %s20, 1
      %p54 = por %p52, %p53
      %p55 = scmp.ne.s32.totalorder %s44, %s45
      %p56 = scmp.eq.s32.totalorder %s20, 0
      %p57 = por %p55, %p56
      %p58 = scmp.ne.s32.totalorder %s44, %s45
      %p59 = scmp.eq.s32.totalorder %s21, 1
      %p60 = por %p58, %p59
      %p62 = scmp.ne.s32.totalorder %s45, %s61
      %p63 = scmp.eq.s32.totalorder %s21, 0
      %p64 = por %p62, %p63
      %s66 = sadd.s32 %s65, 1
      %p69 = scmp.eq.s32.totalorder %s15, 1
      %p70 = scmp.ne.s32.totalorder %s65, %s67
      %p71 = scmp.eq.s32.totalorder %s15, 0
      %p72 = por %p70, %p71
      %p73 = scmp.ne.s32.totalorder %s65, %s67
      %p74 = scmp.eq.s32.totalorder %s20, 1
      %p75 = por %p73, %p74
      %p76 = scmp.ne.s32.totalorder %s67, %s68
      %p77 = scmp.eq.s32.totalorder %s20, 0
      %p78 = por %p76, %p77
      %p79 = scmp.ne.s32.totalorder %s67, %s68
      %p80 = scmp.eq.s32.totalorder %s21, 1
      %p81 = por %p79, %p80
      %p83 = scmp.ne.s32.totalorder %s68, %s82
      %p84 = scmp.eq.s32.totalorder %s21, 0
      %p85 = por %p83, %p84
      %s86 = smul.u32 %s23, %s22
      %s87 = smul.u32 %s30, %s34
      %s88 = ssub.s32 %s86, %s87
      %p89 = scmp.eq.s32.totalorder %s88, 0
      %s91 = sadd.s32 %s90, 1
      %s92 = scalar_select %p89, %s90, %s91
      %p95 = pneg %p89
      %p96 = scmp.eq.s32.totalorder %s15, 1
      %p97 = por %p95, %p96
      %p98 = scmp.ne.s32.totalorder %s90, %s93
      %p99 = scmp.eq.s32.totalorder %s15, 0
      %p100 = por %p98, %p99
      %p101 = scmp.ne.s32.totalorder %s90, %s93
      %p102 = scmp.eq.s32.totalorder %s20, 1
      %p103 = por %p101, %p102
      %p104 = scmp.ne.s32.totalorder %s93, %s94
      %p105 = scmp.eq.s32.totalorder %s20, 0
      %p106 = por %p104, %p105
      %p107 = scmp.ne.s32.totalorder %s93, %s94
      %p108 = scmp.eq.s32.totalorder %s21, 1
      %p109 = por %p107, %p108
      %p111 = scmp.ne.s32.totalorder %s94, %s110
      %p112 = scmp.eq.s32.totalorder %s21, 0
      %p113 = por %p111, %p112
      %p114 = scmp.le.s32.totalorder 1, %s15
      %p115 = scmp.lt.s32.totalorder %s15, 3
      %p116 = pnand %p114, %p115
      %p117 = pneg %p116
      // Predicated region
      $region9: #{tpu_custom_call.1} parent=5 // pred_check
        _
      $region10: #{tpu_custom_call.1} parent=5 // pred_check_branch
        %119 = sbr.rel (%p116) target = $region12
      $region11: #{tpu_custom_call.1} parent=5 // pred_region
        %s120 = ssub.s32 %s15, 1
        // Predicated region
        $region13: #{tpu_custom_call.1} parent=11 // pred_check
          %p121 = pneg %p78
        $region14: #{tpu_custom_call.1} parent=11 // pred_check_branch
          %123 = sbr.rel (%p121) target = $region16
        $region15: #{tpu_custom_call.1} parent=11 // pred_region
          %125 = vsyncadd [#allocation9], 0
          %s127 = sshll.u32 %s1, 4
          %s128 = int_to_ptr.hbm [resolvable:$true] %s127
          %s129 = sshll.u32 [#allocation8], 4
          %s130 = int_to_ptr.vmem [resolvable:$true] %s129
          %132 = dma.hbm_to_vmem [thread:$0]  %s128, 128, %s130, [#allocation9]
        $region16: #{tpu_custom_call.1} parent=11 // pred_fallthru
          _
      $region12: #{tpu_custom_call.1} parent=5 // pred_fallthru
        _
      %p133 = scmp.lt.s32.totalorder %s15, 2
      // Predicated region
      $region17: #{tpu_custom_call.1} parent=5 // pred_check
        %p134 = pneg %p133
      $region18: #{tpu_custom_call.1} parent=5 // pred_check_branch
        %136 = sbr.rel (%p134) target = $region20
      $region19: #{tpu_custom_call.1} parent=5 // pred_region
        // Predicated region
        $region21: #{tpu_custom_call.1} parent=19 // pred_check
          %p137 = pneg %p51
        $region22: #{tpu_custom_call.1} parent=19 // pred_check_branch
          %139 = sbr.rel (%p137) target = $region24
        $region23: #{tpu_custom_call.1} parent=19 // pred_region
          %s140 = sand.u32 %s41, 1
          %s141 = scalar_lea.sflag [#allocation6], %s140
          %s142 = sand.u32 %s41, 1
          %s143 = smul.addr %s142, 8
          %s144 = scalar_lea.vmem [#allocation5], %s143
          %s145 = ssub.s32 1, %s22
          %s146 = smul.u32 %s23, %s145
          %148 = vsyncadd %s141, 0
          %s149 = smul.addr %s146, 8
          %s150 = scalar_lea.hbm %s0, %s149
          %s152 = sshll.u32 %s150, 4
          %s153 = int_to_ptr.hbm [resolvable:$true] %s152
          %s154 = sshll.u32 %s144, 4
          %s155 = int_to_ptr.vmem [resolvable:$true] %s154
          %157 = dma.hbm_to_vmem [thread:$0]  %s153, 128, %s155, %s141
        $region24: #{tpu_custom_call.1} parent=19 // pred_fallthru
          _
      $region20: #{tpu_custom_call.1} parent=5 // pred_fallthru
        _
      %p158 = scmp.le.s32.totalorder 1, %s15
      %p159 = scmp.lt.s32.totalorder %s15, 3
      %p160 = pnand %p158, %p159
      %p161 = pneg %p160
      // Predicated region
      $region25: #{tpu_custom_call.1} parent=5 // pred_check
        _
      $region26: #{tpu_custom_call.1} parent=5 // pred_check_branch
        %163 = sbr.rel (%p160) target = $region28
      $region27: #{tpu_custom_call.1} parent=5 // pred_region
        %s164 = ssub.s32 %s15, 1
        %s165 = sand.u32 %s44, 1
        %s166 = scalar_lea.sflag [#allocation6], %s165
        %s167 = sand.u32 %s44, 1
        %s168 = smul.addr %s167, 8
        %s169 = scalar_lea.vmem [#allocation5], %s168
        // Predicated region
        $region29: #{tpu_custom_call.1} parent=27 // pred_check
          %p170 = pneg %p57
        $region30: #{tpu_custom_call.1} parent=27 // pred_check_branch
          %172 = sbr.rel (%p170) target = $region32
        $region31: #{tpu_custom_call.1} parent=27 // pred_region
          %174 = dma.done %s166, 128
        $region32: #{tpu_custom_call.1} parent=27 // pred_fallthru
          _
        // Predicated region
        $region33: #{tpu_custom_call.1} parent=27 // pred_check
          %p175 = pneg %p78
        $region34: #{tpu_custom_call.1} parent=27 // pred_check_branch
          %177 = sbr.rel (%p175) target = $region36
        $region35: #{tpu_custom_call.1} parent=27 // pred_region
          %179 = dma.done [#allocation9], 128
        $region36: #{tpu_custom_call.1} parent=27 // pred_fallthru
          _
        %s180 = sand.u32 %s44, 1
        %s181 = scalar_lea.sflag [#allocation6], %s180
        %s182 = sand.u32 %s44, 1
        %s183 = smul.addr %s182, 8
        %s184 = scalar_lea.vmem [#allocation5], %s183
        %p185 = pneg %p57
        %p186 = pneg %p54
        %p187 = pneg %p78
        %p188 = pneg %p75
        %p189 = pneg %p106
        %p190 = pneg %p103
        %s191 = sand.u32 %s93, 1
        %s192 = scalar_lea.sflag [#allocation7], %s191
        %s193 = sand.u32 %s93, 1
        %s194 = smul.addr %s193, 8
        %s195 = scalar_lea.vmem [#allocation10], %s194
        %s196 = ssub.s32 1, %s24
        %s197 = smul.u32 %s25, %s196
        %s198 = smul.u32 %s25, %s24
        %p199 = scmp.eq.s32.totalorder %s24, 0
        %p200 = scmp.eq.s32.totalorder %s25, 0
        %p201 = pnand %p199, %p200
        %p202 = pneg %p201
        // Predicated region
        $region37: #{tpu_custom_call.1} parent=27 // pred_check
          _
        $region38: #{tpu_custom_call.1} parent=27 // pred_check_branch
          %204 = sbr.rel (%p201) target = $region40
        $region39: #{tpu_custom_call.1} parent=27 // pred_region
          %vm205 = vcmask 7168
          %206 = vst.msk [vmem:[#allocation2] sm:$0xff] %vm205, 0.0
          %207 = vst.msk [vmem:[#allocation3] sm:$0xff] %vm205, 0.0
        $region40: #{tpu_custom_call.1} parent=27 // pred_fallthru
          _
        // Predicated region
        $region41: #{tpu_custom_call.1} parent=27 // pred_check
          %p208 = pneg %p199
        $region42: #{tpu_custom_call.1} parent=27 // pred_check_branch
          %210 = sbr.rel (%p208) target = $region44
        $region43: #{tpu_custom_call.1} parent=27 // pred_region
          %v211 = vld [vmem:[#allocation8] sm:$0xff]
          %v212 = vld [vmem:[%s169] sm:$0xff]
          %vm213 = vcmask 64512
          %v215 = vsel %vm213, %v211, 0
          %217 = vmatpush.msra.mxu0 0.0
          %218 = vmatpush.msra.mxu0 0.0
          %219 = vmatpush.msra.mxu0 0.0
          %220 = vmatpush.msra.mxu0 0.0
          %221 = vmatpush.msra.mxu0 0.0
          %222 = vmatpush.msra.mxu0 0.0
          %223 = vmatpush.msra.mxu0 0.0
          %224 = vmatpush.msra.mxu0 0.0
          %225 = vmatpush.msra.mxu0 0.0
          %226 = vmatpush.msra.mxu0 0.0
          %227 = vmatpush.msra.mxu0 0.0
          %228 = vmatpush.msra.mxu0 0.0
          %229 = vmatpush.msra.mxu0 0.0
          %230 = vmatpush.msra.mxu0 0.0
          %231 = vmatpush.msra.mxu0 0.0
          %232 = vmatpush.msra.mxu0 %v212
          %233 = vmatmul.f32.gmra.mxu0 %v215
          %v234 = vpop.f32.mrf.mxu0
          %v235 = vadd.f32 0.0, %v234
          %236 = vdwg.mxu0
          %s237 = smul.u32 %s25, 8
          %s238 = scalar_lea.vmem [#allocation4], %s237
          %239 = vst [vmem:[%s238] sm:$0xff] %v235
          %v240 = vld [vmem:[#allocation2] sm:$0xff]
          %241 = vadd.xlane.f32.xlu0 %v235
          %v242 = vpop.xlane.xlu0 %241
          %v243 = vadd.f32 %v240, %v242
          %vm244 = vcmask 7168
          %245 = vst.msk [vmem:[#allocation2] sm:$0xff] %vm244, %v243
          %v246 = vld [vmem:[#allocation3] sm:$0xff]
          %v247 = vmul.f32 %v235, %v235
          %248 = vadd.xlane.f32.xlu0 %v247
          %v249 = vpop.xlane.xlu0 %248
          %v250 = vadd.f32 %v246, %v249
          %251 = vst.msk [vmem:[#allocation3] sm:$0xff] %vm244, %v250
        $region44: #{tpu_custom_call.1} parent=27 // pred_fallthru
          _
        %p252 = scmp.eq.s32.totalorder %s24, 1
        // Predicated region
        $region45: #{tpu_custom_call.1} parent=27 // pred_check
          %p253 = pneg %p252
        $region46: #{tpu_custom_call.1} parent=27 // pred_check_branch
          %255 = sbr.rel (%p253) target = $region48
        $region47: #{tpu_custom_call.1} parent=27 // pred_region
          %s256 = smul.u32 %s25, 8
          %s257 = scalar_lea.vmem [#allocation4], %s256
          %v258 = vld [vmem:[%s257] sm:$0xff]
          %v259 = vld [vmem:[#allocation2] sm:$0xff]
          %v260 = vmul.f32 %v259, 0.0078125
          %v261 = vld [vmem:[#allocation3] sm:$0xff]
          %v262 = vmul.f32 %v261, 0.0078125
          %v263 = vmul.f32 %v260, %v260
          %v264 = vsub.f32 %v262, %v263
          %v265 = vmax.f32 %v264, 0.0
          %267 = vset.pattern.permute.xlu0 0
          %268 = vperm.xlu0 %267, %v260
          %v269 = vpop.permute.xlu0 %268
          %v271 = vsub.f32 %v258, %v269
          %v272 = vadd.f32 %v265, 1e-05
          %v273 = vrsqrt.pop %v272
          %v274 = vmul.f32 %v273, %v272
          %v275 = vmul.f32 %v274, %v273
          %v276 = vmul.f32 0.5, %v275
          %v277 = vsub.f32 1.5, %v276
          %v278 = vmul.f32 %v273, %v277
          %vm279 = vweird.f32 %v272
          %vm280 = vweird.f32 %v273
          %vm281 = vmor %vm279, %vm280
          %v282 = vsel %vm281, %v273, %v278
          %284 = vset.pattern.permute.xlu0 0
          %285 = vperm.xlu0 %284, %v282
          %v286 = vpop.permute.xlu0 %285
          %v288 = vmul.f32 %v271, %v286
          %289 = vst [vmem:[%s195] sm:$0xff] %v288
        $region48: #{tpu_custom_call.1} parent=27 // pred_fallthru
          _
        %s290 = sand.u32 %s93, 1
        %s291 = scalar_lea.sflag [#allocation7], %s290
        %s292 = sand.u32 %s93, 1
        %s293 = smul.addr %s292, 8
        %s294 = scalar_lea.vmem [#allocation10], %s293
        // Predicated region
        $region49: #{tpu_custom_call.1} parent=27 // pred_check
          %p295 = pneg %p103
        $region50: #{tpu_custom_call.1} parent=27 // pred_check_branch
          %297 = sbr.rel (%p295) target = $region52
        $region51: #{tpu_custom_call.1} parent=27 // pred_region
          %s298 = smul.u32 %s25, %s24
          %300 = vsyncadd %s291, 0
          %s301 = smul.addr %s298, 8
          %s302 = scalar_lea.hbm %s2, %s301
          %s304 = sshll.u32 %s294, 4
          %s305 = int_to_ptr.vmem [resolvable:$true] %s304
          %s306 = sshll.u32 %s302, 4
          %s307 = int_to_ptr.hbm [resolvable:$true] %s306
          %309 = dma.vmem_to_hbm [thread:$0]  %s305, 128, %s307, %s291
        $region52: #{tpu_custom_call.1} parent=27 // pred_fallthru
          _
      $region28: #{tpu_custom_call.1} parent=5 // pred_fallthru
        _
      %p310 = scmp.le.s32.totalorder 2, %s15
      // Predicated region
      $region53: #{tpu_custom_call.1} parent=5 // pred_check
        %p311 = pneg %p310
      $region54: #{tpu_custom_call.1} parent=5 // pred_check_branch
        %313 = sbr.rel (%p311) target = $region56
      $region55: #{tpu_custom_call.1} parent=5 // pred_region
        %s314 = ssub.s32 %s15, 2
        // Predicated region
        $region57: #{tpu_custom_call.1} parent=55 // pred_check
          %p315 = pneg %p109
        $region58: #{tpu_custom_call.1} parent=55 // pred_check_branch
          %317 = sbr.rel (%p315) target = $region60
        $region59: #{tpu_custom_call.1} parent=55 // pred_region
          %s318 = sand.u32 %s94, 1
          %s319 = scalar_lea.sflag [#allocation7], %s318
          %s320 = sand.u32 %s94, 1
          %s321 = smul.addr %s320, 8
          %s322 = scalar_lea.vmem [#allocation10], %s321
          %324 = dma.done %s319, 128
        $region60: #{tpu_custom_call.1} parent=55 // pred_fallthru
          _
      $region56: #{tpu_custom_call.1} parent=5 // pred_fallthru
        _
    $region6: #{tpu_custom_call.1} parent=1 // loop_footer
      %s19 = sadd.s32 1, %s15
    $region7: #{tpu_custom_call.1} parent=1 // loop_footer_branch
      %14 = sbr.rel target = $region3
    $region8: #{tpu_custom_call.1} parent=1 // loop_exit
      _
    %325 = vsyncpa [#allocation6], 1
    %s326 = scalar_lea.sflag [#allocation6], 1
    %327 = vsyncpa %s326, 1
    %328 = vsyncpa [#allocation9], 1
    %329 = vsyncpa [#allocation7], 1
    %s330 = scalar_lea.sflag [#allocation7], 1
    %331 = vsyncpa %s330, 1

</llo_original>
